<compile_context>
chip_gen: v7x
topology: tpu7x:2x2x1
jax: 0.10.0
libtpu: 0.0.40
codegen_flags: <defaults>
</compile_context>

<pallas_src>
import functools

import jax
import jax.numpy as jnp
from jax import lax
from jax.experimental import pallas as pl
from jax.experimental.pallas import tpu as pltpu


def _round_up(n, m):
    return ((n + m - 1) // m) * m


def _cdiv(a, b):
    return (a + b - 1) // b


def _mlp_kernel(x_ref, w1_ref, b1_ref, w2_ref, b2_ref, w3t_ref, b3t_ref, ot_ref):
    # Whole MLP hot path (3 matmuls + 2 ReLUs + bias adds) on one batch tile.
    x = x_ref[...]                                                   # (tb, 63)
    h1 = jnp.dot(x, w1_ref[...], preferred_element_type=jnp.float32) + b1_ref[...]
    h1 = jnp.maximum(h1, 0.0)                                        # (tb, 128)
    h2 = jnp.dot(h1, w2_ref[...], preferred_element_type=jnp.float32) + b2_ref[...]
    h2 = jnp.maximum(h2, 0.0)                                        # (tb, 64)
    # Transposed last layer: contract h2's feature dim against w3t's feature dim
    # -> (nc_pad, tb). Lane dim is the batch tile => lane-dense output writeback.
    ot = lax.dot_general(
        w3t_ref[...], h2, (((1,), (1,)), ((), ())),
        preferred_element_type=jnp.float32,
    )
    ot_ref[...] = ot + b3t_ref[...]                                  # (nc_pad,1) broadcast


@functools.partial(jax.jit, static_argnames=("num_classes", "block_b"))
def gesture_classifier_forward(x, kparams, *, num_classes, block_b=4096):
    """Pallas forward pass of GestureClassifier.

    x: (B, input_size) float32 (unpadded).
    kparams: output of prepare_params(): w1 (in,128), b1 (1,128), w2 (128,64),
             b2 (1,64), w3t (nc_pad,64), b3t (nc_pad,1).
    """
    B, in_features = x.shape
    h1_dim = kparams["w1"].shape[1]          # 128
    h2_dim = kparams["w2"].shape[1]          # 64
    nc_pad = kparams["w3t"].shape[0]         # num_classes rounded up to 8 sublanes

    # --- batch tiling: big balanced tiles; >=2 tiles for very large B (v7x 2 TCs)
    n_tiles = max(1, _cdiv(B, block_b))
    if B >= 4096:
        n_tiles = max(n_tiles, 2)
    if n_tiles == 1:
        tb = _round_up(B, 8)                 # single (possibly partial) tile
    else:
        tb = _round_up(_cdiv(B, n_tiles), 128)  # lane constraint of transposed out
    grid_b = _cdiv(B, tb)
    b_pad = grid_b * tb                      # only the tiny transposed output is padded

    resident = lambda i: (0, 0)              # weights/biases stay VMEM-resident

    out_t = pl.pallas_call(
        _mlp_kernel,
        out_shape=jax.ShapeDtypeStruct((nc_pad, b_pad), jnp.float32),
        grid=(grid_b,),
        in_specs=[
            pl.BlockSpec((tb, in_features), lambda i: (i, 0)),   # x tile (unpadded K=63)
            pl.BlockSpec((in_features, h1_dim), resident),       # w1 (63,128)
            pl.BlockSpec((1, h1_dim), resident),                 # b1
            pl.BlockSpec((h1_dim, h2_dim), resident),            # w2 (128,64)
            pl.BlockSpec((1, h2_dim), resident),                 # b2
            pl.BlockSpec((nc_pad, h2_dim), resident),            # w3^T (nc_pad,64)
            pl.BlockSpec((nc_pad, 1), resident),                 # b3^T (nc_pad,1)
        ],
        out_specs=pl.BlockSpec((nc_pad, tb), lambda i: (0, i)),
        compiler_params=pltpu.CompilerParams(
            dimension_semantics=("parallel",),
            vmem_limit_bytes=32 * 1024 * 1024,
        ),
    )(x, kparams["w1"], kparams["b1"], kparams["w2"], kparams["b2"],
      kparams["w3t"], kparams["b3t"])

    # (nc_pad, b_pad) -> (B, num_classes)
    return out_t[:num_classes, :B].T


def prepare_params(params):
    """One-time weight layout for the kernel (outside the hot path).

    Transposes + sublane-pads the last layer; keeps w1 at K=63 (no K padding
    needed since x is passed unpadded).
    """
    num_classes = params["w3"].shape[1]
    nc_pad = _round_up(num_classes, 8)
    w3t = jnp.pad(params["w3"].T, ((0, nc_pad - num_classes), (0, 0)))   # (nc_pad, 64)
    b3t = jnp.pad(params["b3"].T, ((0, nc_pad - num_classes), (0, 0)))   # (nc_pad, 1)
    return {
        "w1": params["w1"], "b1": params["b1"],
        "w2": params["w2"], "b2": params["b2"],
        "w3t": w3t, "b3t": b3t,
    }


def init_params(key, input_size=63, num_classes=4):
    """Deterministic init mirroring nn.Linear default (U[-1/sqrt(fan_in), +])."""
    ks = jax.random.split(key, 6)

    def linear(kw, kb, fan_in, fan_out):
        bound = 1.0 / jnp.sqrt(jnp.asarray(fan_in, jnp.float32))
        w = jax.random.uniform(
            kw, (fan_in, fan_out), jnp.float32, minval=-bound, maxval=bound
        )
        b = jax.random.uniform(
            kb, (1, fan_out), jnp.float32, minval=-bound, maxval=bound
        )
        return w, b

    w1, b1 = linear(ks[0], ks[1], input_size, 128)
    w2, b2 = linear(ks[2], ks[3], 128, 64)
    w3, b3 = linear(ks[4], ks[5], 64, num_classes)
    return {"w1": w1, "b1": b1, "w2": w2, "b2": b2, "w3": w3, "b3": b3}


def _reference(x, params):
    h1 = jnp.maximum(x @ params["w1"] + params["b1"], 0.0)
    h2 = jnp.maximum(h1 @ params["w2"] + params["b2"], 0.0)
    return h2 @ params["w3"] + params["b3"]


if __name__ == "__main__":
    key = jax.random.PRNGKey(0)
    k_x, k_x2, k_p = jax.random.split(key, 3)

    input_size = 63
    num_classes = 4
    params = init_params(k_p, input_size=input_size, num_classes=num_classes)
    kparams = prepare_params(params)   # one-time kernel layout, outside the hot jit

    # Small-batch (single grid step, latency path; ragged K=63 input, B=8).
    batch = 8
    x = jax.random.normal(k_x, (batch, input_size), dtype=jnp.float32)
    out = jax.block_until_ready(
        gesture_classifier_forward(x, kparams, num_classes=num_classes)
    )
    ref = _reference(x, params)
    assert out.shape == (batch, num_classes)
    assert jnp.allclose(out, ref, atol=1e-4, rtol=1e-4)

    # Larger batch exercising a multi-step grid with balanced 128-row tiles and a
    # ragged (partial) last batch tile: B=300, block_b=128 -> grid of 3.
    batch2 = 300
    x2 = jax.random.normal(k_x2, (batch2, input_size), dtype=jnp.float32)
    out2 = jax.block_until_ready(
        gesture_classifier_forward(x2, kparams, num_classes=num_classes, block_b=128)
    )
    ref2 = _reference(x2, params)
    assert out2.shape == (batch2, num_classes)
    assert jnp.allclose(out2, ref2, atol=1e-4, rtol=1e-4)

    print("KERNEL_OK")
</pallas_src>

<mosaic_0001>
module attributes {stable_mosaic.version = 11 : i64} {
  func.func @_mlp_kernel(%arg0: i32, %arg1: memref<8x63xf32, #tpu.memory_space<vmem>>, %arg2: memref<63x128xf32, #tpu.memory_space<vmem>>, %arg3: memref<1x128xf32, #tpu.memory_space<vmem>>, %arg4: memref<128x64xf32, #tpu.memory_space<vmem>>, %arg5: memref<1x64xf32, #tpu.memory_space<vmem>>, %arg6: memref<8x64xf32, #tpu.memory_space<vmem>>, %arg7: memref<8x1xf32, #tpu.memory_space<vmem>>, %arg8: memref<8x8xf32, #tpu.memory_space<vmem>>) attributes {dimension_semantics = [#tpu.dimension_semantics<parallel>], iteration_bounds = array<i64: 1>, scalar_prefetch = 0 : i64, scratch_operands = 0 : i64, tpu.core_type = #tpu.core_type<tc>, window_params = [{transform_indices = @transform_0, window_bounds = array<i64: 8, 63>}, {pipeline_mode = #tpu.pipeline_mode<synchronous>, transform_indices = @transform_1, window_bounds = array<i64: 63, 128>}, {pipeline_mode = #tpu.pipeline_mode<synchronous>, transform_indices = @transform_2, window_bounds = array<i64: 1, 128>}, {pipeline_mode = #tpu.pipeline_mode<synchronous>, transform_indices = @transform_3, window_bounds = array<i64: 128, 64>}, {pipeline_mode = #tpu.pipeline_mode<synchronous>, transform_indices = @transform_4, window_bounds = array<i64: 1, 64>}, {pipeline_mode = #tpu.pipeline_mode<synchronous>, transform_indices = @transform_5, window_bounds = array<i64: 8, 64>}, {pipeline_mode = #tpu.pipeline_mode<synchronous>, transform_indices = @transform_6, window_bounds = array<i64: 8, 1>}, {transform_indices = @transform_7, window_bounds = array<i64: 8, 8>}]} {
    %c0 = arith.constant 0 : index
    %c0_0 = arith.constant 0 : index
    %0 = vector.load %arg1[%c0, %c0_0] : memref<8x63xf32, #tpu.memory_space<vmem>>, vector<8x63xf32>
    %c0_1 = arith.constant 0 : index
    %c0_2 = arith.constant 0 : index
    %1 = vector.load %arg2[%c0_1, %c0_2] : memref<63x128xf32, #tpu.memory_space<vmem>>, vector<63x128xf32>
    %cst = arith.constant dense<0.000000e+00> : vector<8x128xf32>
    %2 = tpu.matmul %0, %1, %cst {dimension_numbers = #tpu.dot_dimension_numbers<[1], [0], [0], [1], [0, 0, 1, 1], [], []>} : vector<8x63xf32>, vector<63x128xf32>, vector<8x128xf32> -> vector<8x128xf32>
    %c0_3 = arith.constant 0 : index
    %c0_4 = arith.constant 0 : index
    %3 = vector.load %arg3[%c0_3, %c0_4] : memref<1x128xf32, #tpu.memory_space<vmem>>, vector<1x128xf32>
    %4 = vector.broadcast %3 : vector<1x128xf32> to vector<8x128xf32>
    %5 = arith.addf %2, %4 : vector<8x128xf32>
    %cst_5 = arith.constant 0.000000e+00 : f32
    %6 = vector.broadcast %cst_5 : f32 to vector<8x128xf32>
    %7 = arith.maximumf %5, %6 : vector<8x128xf32>
    %c0_6 = arith.constant 0 : index
    %c0_7 = arith.constant 0 : index
    %8 = vector.load %arg4[%c0_6, %c0_7] : memref<128x64xf32, #tpu.memory_space<vmem>>, vector<128x64xf32>
    %cst_8 = arith.constant dense<0.000000e+00> : vector<8x64xf32>
    %9 = tpu.matmul %7, %8, %cst_8 {dimension_numbers = #tpu.dot_dimension_numbers<[1], [0], [0], [1], [0, 0, 1, 1], [], []>} : vector<8x128xf32>, vector<128x64xf32>, vector<8x64xf32> -> vector<8x64xf32>
    %c0_9 = arith.constant 0 : index
    %c0_10 = arith.constant 0 : index
    %10 = vector.load %arg5[%c0_9, %c0_10] : memref<1x64xf32, #tpu.memory_space<vmem>>, vector<1x64xf32>
    %11 = vector.broadcast %10 : vector<1x64xf32> to vector<8x64xf32>
    %12 = arith.addf %9, %11 : vector<8x64xf32>
    %cst_11 = arith.constant 0.000000e+00 : f32
    %13 = vector.broadcast %cst_11 : f32 to vector<8x64xf32>
    %14 = arith.maximumf %12, %13 : vector<8x64xf32>
    %c0_12 = arith.constant 0 : index
    %c0_13 = arith.constant 0 : index
    %15 = vector.load %arg6[%c0_12, %c0_13] : memref<8x64xf32, #tpu.memory_space<vmem>>, vector<8x64xf32>
    %cst_14 = arith.constant dense<0.000000e+00> : vector<8x8xf32>
    %16 = tpu.matmul %15, %14, %cst_14 {dimension_numbers = #tpu.dot_dimension_numbers<[1], [1], [0], [0], [0, 0, 1, 0], [], []>} : vector<8x64xf32>, vector<8x64xf32>, vector<8x8xf32> -> vector<8x8xf32>
    %c0_15 = arith.constant 0 : index
    %c0_16 = arith.constant 0 : index
    %17 = vector.load %arg7[%c0_15, %c0_16] : memref<8x1xf32, #tpu.memory_space<vmem>>, vector<8x1xf32>
    %18 = vector.broadcast %17 : vector<8x1xf32> to vector<8x8xf32>
    %19 = arith.addf %16, %18 : vector<8x8xf32>
    %c0_17 = arith.constant 0 : index
    %c0_18 = arith.constant 0 : index
    %20 = vector.load %arg8[%c0_17, %c0_18] : memref<8x8xf32, #tpu.memory_space<vmem>>, vector<8x8xf32>
    tpu.vector_store %arg8[%c0_17, %c0_18], %19 {strides = array<i32>} : memref<8x8xf32, #tpu.memory_space<vmem>>, vector<8x8xf32>,
    return
  }
  func.func @transform_0(%arg0: i32) -> (i32, i32) {
    %c0_i32 = arith.constant 0 : i32
    %c0_i32_0 = arith.constant 0 : i32
    return %arg0, %c0_i32 : i32, i32
  }
  func.func @transform_1(%arg0: i32) -> (i32, i32) {
    %c0_i32 = arith.constant 0 : i32
    %c0_i32_0 = arith.constant 0 : i32
    %c0_i32_1 = arith.constant 0 : i32
    return %c0_i32, %c0_i32_0 : i32, i32
  }
  func.func @transform_2(%arg0: i32) -> (i32, i32) {
    %c0_i32 = arith.constant 0 : i32
    %c0_i32_0 = arith.constant 0 : i32
    %c0_i32_1 = arith.constant 0 : i32
    return %c0_i32, %c0_i32_0 : i32, i32
  }
  func.func @transform_3(%arg0: i32) -> (i32, i32) {
    %c0_i32 = arith.constant 0 : i32
    %c0_i32_0 = arith.constant 0 : i32
    %c0_i32_1 = arith.constant 0 : i32
    return %c0_i32, %c0_i32_0 : i32, i32
  }
  func.func @transform_4(%arg0: i32) -> (i32, i32) {
    %c0_i32 = arith.constant 0 : i32
    %c0_i32_0 = arith.constant 0 : i32
    %c0_i32_1 = arith.constant 0 : i32
    return %c0_i32, %c0_i32_0 : i32, i32
  }
  func.func @transform_5(%arg0: i32) -> (i32, i32) {
    %c0_i32 = arith.constant 0 : i32
    %c0_i32_0 = arith.constant 0 : i32
    %c0_i32_1 = arith.constant 0 : i32
    return %c0_i32, %c0_i32_0 : i32, i32
  }
  func.func @transform_6(%arg0: i32) -> (i32, i32) {
    %c0_i32 = arith.constant 0 : i32
    %c0_i32_0 = arith.constant 0 : i32
    %c0_i32_1 = arith.constant 0 : i32
    return %c0_i32, %c0_i32_0 : i32, i32
  }
  func.func @transform_7(%arg0: i32) -> (i32, i32) {
    %c0_i32 = arith.constant 0 : i32
    %c0_i32_0 = arith.constant 0 : i32
    return %c0_i32, %arg0 : i32, i32
  }
}

</mosaic_0001>

<llo_original>
// kernel: gesture_classifier_forward.1
$region0: #{gesture_classifier_forward.1}
  #allocation0 [shape = 'u32[]', space=smem, size = 0x4, offset = 0x4, fixed_abs, tag = 'smem constant byte address 0x4 - core index']
  #allocation1 [shape = 'u32[144,128]{1,0:T(1,128)}', space=vmem, size = 0x12000, scoped, tag = 'internal scratch']
  %s0 = inlined_call_operand.vmem [shape: f32[8,63], index: 0, kind: input, shape index: {}]
  %s1 = inlined_call_operand.vmem [shape: f32[63,128], index: 1, kind: input, shape index: {}]
  %s2 = inlined_call_operand.vmem [shape: f32[1,128], index: 2, kind: input, shape index: {}]
  %s3 = inlined_call_operand.vmem [shape: f32[128,64], index: 3, kind: input, shape index: {}]
  %s4 = inlined_call_operand.vmem [shape: f32[1,64], index: 4, kind: input, shape index: {}]
  %s5 = inlined_call_operand.vmem [shape: f32[8,64], index: 5, kind: input, shape index: {}]
  %s6 = inlined_call_operand.vmem [shape: f32[8,1], index: 6, kind: input, shape index: {}]
  %s7 = inlined_call_operand.vmem [shape: f32[8,8], index: 7, kind: output, shape index: {}]
  %s8 = sld [smem:[#allocation0]]
  $region38: #{gesture_classifier_forward.1} parent=0
    _
  %s10 = ssub.s32 1, %s8
  %s11 = scalar_select 0, %s10, %s8
  // Predicated region
  $region2: #{gesture_classifier_forward.1} parent=0 // pred_check
    _
  $region3: #{gesture_classifier_forward.1} parent=0 // pred_check_branch
    %13 = sbr.rel (0) target = $region5
  $region4: #{gesture_classifier_forward.1} parent=0 // pred_region
    _
  $region5: #{gesture_classifier_forward.1} parent=0 // pred_fallthru
    _
  // Predicated region
  $region6: #{gesture_classifier_forward.1} parent=0 // pred_check
    _
  $region7: #{gesture_classifier_forward.1} parent=0 // pred_check_branch
    %15 = sbr.rel (0) target = $region9
  $region8: #{gesture_classifier_forward.1} parent=0 // pred_region
    _
  $region9: #{gesture_classifier_forward.1} parent=0 // pred_fallthru
    _
  // Predicated region
  $region10: #{gesture_classifier_forward.1} parent=0 // pred_check
    _
  $region11: #{gesture_classifier_forward.1} parent=0 // pred_check_branch
    %17 = sbr.rel (0) target = $region13
  $region12: #{gesture_classifier_forward.1} parent=0 // pred_region
    _
  $region13: #{gesture_classifier_forward.1} parent=0 // pred_fallthru
    _
  // Predicated region
  $region14: #{gesture_classifier_forward.1} parent=0 // pred_check
    _
  $region15: #{gesture_classifier_forward.1} parent=0 // pred_check_branch
    %19 = sbr.rel (0) target = $region17
  $region16: #{gesture_classifier_forward.1} parent=0 // pred_region
    _
  $region17: #{gesture_classifier_forward.1} parent=0 // pred_fallthru
    _
  // Predicated region
  $region18: #{gesture_classifier_forward.1} parent=0 // pred_check
    _
  $region19: #{gesture_classifier_forward.1} parent=0 // pred_check_branch
    %21 = sbr.rel (0) target = $region21
  $region20: #{gesture_classifier_forward.1} parent=0 // pred_region
    _
  $region21: #{gesture_classifier_forward.1} parent=0 // pred_fallthru
    _
  // Predicated region
  $region22: #{gesture_classifier_forward.1} parent=0 // pred_check
    _
  $region23: #{gesture_classifier_forward.1} parent=0 // pred_check_branch
    %23 = sbr.rel (0) target = $region25
  $region24: #{gesture_classifier_forward.1} parent=0 // pred_region
    _
  $region25: #{gesture_classifier_forward.1} parent=0 // pred_fallthru
    _
  // Predicated region
  $region26: #{gesture_classifier_forward.1} parent=0 // pred_check
    _
  $region27: #{gesture_classifier_forward.1} parent=0 // pred_check_branch
    %25 = sbr.rel (0) target = $region29
  $region28: #{gesture_classifier_forward.1} parent=0 // pred_region
    _
  $region29: #{gesture_classifier_forward.1} parent=0 // pred_fallthru
    _
  %v26 = vld [vmem:[%s0] sm:$0xff]
  %v27 = vld [vmem:[%s1] sm:$0xff]
  %v28 = vld [vmem:[%s1 + $0x8] sm:$0xff]
  %v29 = vld [vmem:[%s1 + $0x10] sm:$0xff]
  %v30 = vld [vmem:[%s1 + $0x18] sm:$0xff]
  %v31 = vld [vmem:[%s1 + $0x20] sm:$0xff]
  %v32 = vld [vmem:[%s1 + $0x28] sm:$0xff]
  %v33 = vld [vmem:[%s1 + $0x30] sm:$0xff]
  %v34 = vld [vmem:[%s1 + $0x38] sm:$0x7f]
  %v35 = vld [vmem:[%s2] sm:$0x1]
  %v37 = vlaneseq
  %v38 = vshrl.u32 %v37, 7
  %v39 = vsub.s32 0, %v38
  %v40 = vrot.slane %v35, %v39
  %vm42 = vcmask 515072
  %v44 = vsel %vm42, %v26, 0
  %vm46 = vcmask 1046528
  %v48 = vsel %vm46, %v34, 0
  %50 = vmatprep.subr.mxu0 0.0
  %51 = vmatpush1.msra.mxu0 %v27
  %52 = vmatprep.subr.mxu0 0.0
  %53 = vmatpush1.msra.mxu0 %v28
  %54 = vmatprep.subr.mxu0 0.0
  %55 = vmatpush1.msra.mxu0 %v29
  %56 = vmatprep.subr.mxu0 0.0
  %57 = vmatpush1.msra.mxu0 %v30
  %58 = vmatprep.subr.mxu0 0.0
  %59 = vmatpush1.msra.mxu0 %v31
  %60 = vmatprep.subr.mxu0 0.0
  %61 = vmatpush1.msra.mxu0 %v32
  %62 = vmatprep.subr.mxu0 0.0
  %63 = vmatpush1.msra.mxu0 %v33
  %64 = vmatprep.subr.mxu0 0.0
  %65 = vmatpush1.msra.mxu0 %v48
  %66 = vmatprep.subr.mxu0 0.0
  %67 = vmatpush1.msra.mxu0 0.0
  %68 = vmatprep.subr.mxu0 0.0
  %69 = vmatpush1.msra.mxu0 0.0
  %70 = vmatprep.subr.mxu0 0.0
  %71 = vmatpush1.msra.mxu0 0.0
  %72 = vmatprep.subr.mxu0 0.0
  %73 = vmatpush1.msra.mxu0 0.0
  %74 = vmatprep.subr.mxu0 0.0
  %75 = vmatpush1.msra.mxu0 0.0
  %76 = vmatprep.subr.mxu0 0.0
  %77 = vmatpush1.msra.mxu0 0.0
  %78 = vmatprep.subr.mxu0 0.0
  %79 = vmatpush1.msra.mxu0 0.0
  %80 = vmatprep.subr.mxu0 0.0
  %81 = vmatpush1.msra.mxu0 0.0
  %82 = vmatprep.subr.mxu0 0.0
  %83 = vmatpush1.msra.mxu0 0.0
  %84 = vmatprep.subr.mxu0 0.0
  %85 = vmatpush1.msra.mxu0 0.0
  %86 = vmatprep.subr.mxu0 0.0
  %87 = vmatpush1.msra.mxu0 0.0
  %88 = vmatprep.subr.mxu0 0.0
  %89 = vmatpush1.msra.mxu0 0.0
  %90 = vmatprep.subr.mxu0 0.0
  %91 = vmatpush1.msra.mxu0 0.0
  %92 = vmatprep.subr.mxu0 0.0
  %93 = vmatpush1.msra.mxu0 0.0
  %94 = vmatprep.subr.mxu0 0.0
  %95 = vmatpush1.msra.mxu0 0.0
  %96 = vmatprep.subr.mxu0 0.0
  %97 = vmatpush1.msra.mxu0 0.0
  %98 = vmatprep.subr.mxu0 0.0
  %99 = vmatpush1.msra.mxu0 0.0
  %100 = vmatprep.subr.mxu0 0.0
  %101 = vmatpush1.msra.mxu0 0.0
  %102 = vmatprep.subr.mxu0 0.0
  %103 = vmatpush1.msra.mxu0 0.0
  %104 = vmatprep.subr.mxu0 0.0
  %105 = vmatpush1.msra.mxu0 0.0
  %106 = vmatprep.subr.mxu0 0.0
  %107 = vmatpush1.msra.mxu0 0.0
  %108 = vmatprep.subr.mxu0 0.0
  %109 = vmatpush1.msra.mxu0 0.0
  %110 = vmatprep.subr.mxu0 0.0
  %111 = vmatpush1.msra.mxu0 0.0
  %112 = vmatprep.subr.mxu0 0.0
  %113 = vmatpush1.msra.mxu0 0.0
  %114 = vmatprep.mubr.f32.mxu0 0.0
  %115 = vmatmul.mubr.f32.gmra.mrb[0].mxu0 %v44
  %v116 = vpop.f32.mrb[0].mxu0
  %v117 = vadd.f32 %v40, %v116
  %v118 = vpop.f32.mrb[0].mxu0
  %119 = vdwg.mxu0
  %v120 = vmax.f32 %v117, 0.0
  %v121 = vld [vmem:[%s3] sm:$0xff]
  %v122 = vld [vmem:[%s3 + $0x8] sm:$0xff]
  %v123 = vld [vmem:[%s3 + $0x10] sm:$0xff]
  %v124 = vld [vmem:[%s3 + $0x18] sm:$0xff]
  %v125 = vld [vmem:[%s3 + $0x20] sm:$0xff]
  %v126 = vld [vmem:[%s3 + $0x28] sm:$0xff]
  %v127 = vld [vmem:[%s3 + $0x30] sm:$0xff]
  %v128 = vld [vmem:[%s3 + $0x38] sm:$0xff]
  %v129 = vld [vmem:[%s3 + $0x40] sm:$0xff]
  %v130 = vld [vmem:[%s3 + $0x48] sm:$0xff]
  %v131 = vld [vmem:[%s3 + $0x50] sm:$0xff]
  %v132 = vld [vmem:[%s3 + $0x58] sm:$0xff]
  %v133 = vld [vmem:[%s3 + $0x60] sm:$0xff]
  %v134 = vld [vmem:[%s3 + $0x68] sm:$0xff]
  %v135 = vld [vmem:[%s3 + $0x70] sm:$0xff]
  %v136 = vld [vmem:[%s3 + $0x78] sm:$0xff]
  %v137 = vld [vmem:[%s4] sm:$0x1]
  %v139 = vlaneseq
  %v140 = vshrl.u32 %v139, 7
  %v141 = vsub.s32 0, %v140
  %v142 = vrot.slane %v137, %v141
  %144 = vmatprep.subr.mxu0 0.0
  %145 = vmatpush1.msra.mxu0 %v121
  %146 = vmatprep.subr.mxu0 0.0
  %147 = vmatpush1.msra.mxu0 %v122
  %148 = vmatprep.subr.mxu0 0.0
  %149 = vmatpush1.msra.mxu0 %v123
  %150 = vmatprep.subr.mxu0 0.0
  %151 = vmatpush1.msra.mxu0 %v124
  %152 = vmatprep.subr.mxu0 0.0
  %153 = vmatpush1.msra.mxu0 %v125
  %154 = vmatprep.subr.mxu0 0.0
  %155 = vmatpush1.msra.mxu0 %v126
  %156 = vmatprep.subr.mxu0 0.0
  %157 = vmatpush1.msra.mxu0 %v127
  %158 = vmatprep.subr.mxu0 0.0
  %159 = vmatpush1.msra.mxu0 %v128
  %160 = vmatprep.subr.mxu0 0.0
  %161 = vmatpush1.msra.mxu0 %v129
  %162 = vmatprep.subr.mxu0 0.0
  %163 = vmatpush1.msra.mxu0 %v130
  %164 = vmatprep.subr.mxu0 0.0
  %165 = vmatpush1.msra.mxu0 %v131
  %166 = vmatprep.subr.mxu0 0.0
  %167 = vmatpush1.msra.mxu0 %v132
  %168 = vmatprep.subr.mxu0 0.0
  %169 = vmatpush1.msra.mxu0 %v133
  %170 = vmatprep.subr.mxu0 0.0
  %171 = vmatpush1.msra.mxu0 %v134
  %172 = vmatprep.subr.mxu0 0.0
  %173 = vmatpush1.msra.mxu0 %v135
  %174 = vmatprep.subr.mxu0 0.0
  %175 = vmatpush1.msra.mxu0 %v136
  %176 = vmatprep.subr.mxu0 0.0
  %177 = vmatpush1.msra.mxu0 0.0
  %178 = vmatprep.subr.mxu0 0.0
  %179 = vmatpush1.msra.mxu0 0.0
  %180 = vmatprep.subr.mxu0 0.0
  %181 = vmatpush1.msra.mxu0 0.0
  %182 = vmatprep.subr.mxu0 0.0
  %183 = vmatpush1.msra.mxu0 0.0
  %184 = vmatprep.subr.mxu0 0.0
  %185 = vmatpush1.msra.mxu0 0.0
  %186 = vmatprep.subr.mxu0 0.0
  %187 = vmatpush1.msra.mxu0 0.0
  %188 = vmatprep.subr.mxu0 0.0
  %189 = vmatpush1.msra.mxu0 0.0
  %190 = vmatprep.subr.mxu0 0.0
  %191 = vmatpush1.msra.mxu0 0.0
  %192 = vmatprep.subr.mxu0 0.0
  %193 = vmatpush1.msra.mxu0 0.0
  %194 = vmatprep.subr.mxu0 0.0
  %195 = vmatpush1.msra.mxu0 0.0
  %196 = vmatprep.subr.mxu0 0.0
  %197 = vmatpush1.msra.mxu0 0.0
  %198 = vmatprep.subr.mxu0 0.0
  %199 = vmatpush1.msra.mxu0 0.0
  %200 = vmatprep.subr.mxu0 0.0
  %201 = vmatpush1.msra.mxu0 0.0
  %202 = vmatprep.subr.mxu0 0.0
  %203 = vmatpush1.msra.mxu0 0.0
  %204 = vmatprep.subr.mxu0 0.0
  %205 = vmatpush1.msra.mxu0 0.0
  %206 = vmatprep.subr.mxu0 0.0
  %207 = vmatpush1.msra.mxu0 0.0
  %208 = vmatprep.mubr.f32.mxu0 0.0
  %209 = vmatmul.mubr.f32.gmra.mrb[0].mxu0 %v120
  %v210 = vpop.f32.mrb[0].mxu0
  %v211 = vadd.f32 %v142, %v210
  %v212 = vpop.f32.mrb[0].mxu0
  %213 = vdwg.mxu0
  %v214 = vmax.f32 %v211, 0.0
  %v215 = vld [vmem:[%s5] sm:$0xff]
  %v216 = vld [vmem:[%s6] sm:$0xff]
  %218 = vset.pattern.permute.xlu0 0
  %219 = vperm.xlu0 %218, %v216
  %v220 = vpop.permute.xlu0 %219
  %vm222 = vcmask 523264
  %v224 = vsel %vm222, %v215, 0
  %v227 = vsel %vm222, %v214, 0
  %229 = vmatprep.subr.mxu0 0.0
  %230 = vmatpush1.xpose.msra.mxu0 %v227
  %231 = vmatprep.subr.mxu0 0.0
  %232 = vmatpush1.xpose.msra.mxu0 0.0
  %233 = vmatprep.subr.mxu0 0.0
  %234 = vmatpush1.xpose.msra.mxu0 0.0
  %235 = vmatprep.subr.mxu0 0.0
  %236 = vmatpush1.xpose.msra.mxu0 0.0
  %237 = vmatprep.subr.mxu0 0.0
  %238 = vmatpush1.xpose.msra.mxu0 0.0
  %239 = vmatprep.subr.mxu0 0.0
  %240 = vmatpush1.xpose.msra.mxu0 0.0
  %241 = vmatprep.subr.mxu0 0.0
  %242 = vmatpush1.xpose.msra.mxu0 0.0
  %243 = vmatprep.subr.mxu0 0.0
  %244 = vmatpush1.xpose.msra.mxu0 0.0
  %245 = vmatprep.subr.mxu0 0.0
  %246 = vmatpush1.xpose.msra.mxu0 0.0
  %247 = vmatprep.subr.mxu0 0.0
  %248 = vmatpush1.xpose.msra.mxu0 0.0
  %249 = vmatprep.subr.mxu0 0.0
  %250 = vmatpush1.xpose.msra.mxu0 0.0
  %251 = vmatprep.subr.mxu0 0.0
  %252 = vmatpush1.xpose.msra.mxu0 0.0
  %253 = vmatprep.subr.mxu0 0.0
  %254 = vmatpush1.xpose.msra.mxu0 0.0
  %255 = vmatprep.subr.mxu0 0.0
  %256 = vmatpush1.xpose.msra.mxu0 0.0
  %257 = vmatprep.subr.mxu0 0.0
  %258 = vmatpush1.xpose.msra.mxu0 0.0
  %259 = vmatprep.subr.mxu0 0.0
  %260 = vmatpush1.xpose.msra.mxu0 0.0
  %261 = vmatprep.subr.mxu0 0.0
  %262 = vmatpush1.xpose.msra.mxu0 0.0
  %263 = vmatprep.subr.mxu0 0.0
  %264 = vmatpush1.xpose.msra.mxu0 0.0
  %265 = vmatprep.subr.mxu0 0.0
  %266 = vmatpush1.xpose.msra.mxu0 0.0
  %267 = vmatprep.subr.mxu0 0.0
  %268 = vmatpush1.xpose.msra.mxu0 0.0
  %269 = vmatprep.subr.mxu0 0.0
  %270 = vmatpush1.xpose.msra.mxu0 0.0
  %271 = vmatprep.subr.mxu0 0.0
  %272 = vmatpush1.xpose.msra.mxu0 0.0
  %273 = vmatprep.subr.mxu0 0.0
  %274 = vmatpush1.xpose.msra.mxu0 0.0
  %275 = vmatprep.subr.mxu0 0.0
  %276 = vmatpush1.xpose.msra.mxu0 0.0
  %277 = vmatprep.subr.mxu0 0.0
  %278 = vmatpush1.xpose.msra.mxu0 0.0
  %279 = vmatprep.subr.mxu0 0.0
  %280 = vmatpush1.xpose.msra.mxu0 0.0
  %281 = vmatprep.subr.mxu0 0.0
  %282 = vmatpush1.xpose.msra.mxu0 0.0
  %283 = vmatprep.subr.mxu0 0.0
  %284 = vmatpush1.xpose.msra.mxu0 0.0
  %285 = vmatprep.subr.mxu0 0.0
  %286 = vmatpush1.xpose.msra.mxu0 0.0
  %287 = vmatprep.subr.mxu0 0.0
  %288 = vmatpush1.xpose.msra.mxu0 0.0
  %289 = vmatprep.subr.mxu0 0.0
  %290 = vmatpush1.xpose.msra.mxu0 0.0
  %291 = vmatprep.subr.mxu0 0.0
  %292 = vmatpush1.xpose.msra.mxu0 0.0
  %293 = vmatprep.mubr.f32.mxu0 0.0
  %294 = vmatmul.mubr.f32.gmra.mrb[0].mxu0 %v224
  %v295 = vpop.f32.mrb[0].mxu0
  %v296 = vadd.f32 %v220, %v295
  %v297 = vpop.f32.mrb[0].mxu0
  %298 = vdwg.mxu0
  %vm299 = vcmask 64512
  %300 = vst.msk [vmem:[%s7] sm:$0xff] %vm299, %v296
  // Predicated region
  $region30: #{gesture_classifier_forward.1} parent=0 // pred_check
    _
  $region31: #{gesture_classifier_forward.1} parent=0 // pred_check_branch
    %302 = sbr.rel (0) target = $region33
  $region32: #{gesture_classifier_forward.1} parent=0 // pred_region
    _
  $region33: #{gesture_classifier_forward.1} parent=0 // pred_fallthru
    _
  // Predicated region
  $region34: #{gesture_classifier_forward.1} parent=0 // pred_check
    _
  $region35: #{gesture_classifier_forward.1} parent=0 // pred_check_branch
    %304 = sbr.rel (0) target = $region37
  $region36: #{gesture_classifier_forward.1} parent=0 // pred_region
    _
  $region37: #{gesture_classifier_forward.1} parent=0 // pred_fallthru
    _

</llo_original>
